<compile_context>
chip_gen: v7x
topology: tpu7x:2x2x1
jax: 0.10.0
libtpu: 0.0.40
codegen_flags: <defaults>
</compile_context>

<pallas_src>
import functools

import jax
import jax.numpy as jnp
from jax.experimental import pallas as pl
from jax.experimental.pallas import tpu as pltpu


def _round_up(x, m):
    return ((x + m - 1) // m) * m


def _cdiv(a, b):
    return -(-a // b)


def _affine_kernel(x_ref, w_ref, b_ref, o_ref):
    """One batch tile: out = x @ W + b. Single MXU matmul, f32 accumulation,
    f32 epilogue (v5e-safe: no bf16 VPU work)."""
    h = jnp.dot(x_ref[...], w_ref[...], preferred_element_type=jnp.float32)
    h = h + b_ref[...].astype(jnp.float32)
    o_ref[...] = h.astype(o_ref.dtype)


def fold_affine_chain(params, n_layers):
    """Collapse the activation-free Linear chain into one (W_eff, b_eff).

    (((x@W0+b0)@W1+b1)...) == x @ (W0@W1@...) + fold(biases).
    Tiny wrapper-side matmuls, done in full-f32 precision.
    """
    w0, b0 = params[0]
    W = w0.astype(jnp.float32)
    bias = b0.astype(jnp.float32)
    hp = jax.lax.Precision.HIGHEST
    for wi, bi in params[1:n_layers]:
        wi = wi.astype(jnp.float32)
        W = jnp.dot(W, wi, precision=hp)
        bias = jnp.dot(bias, wi, precision=hp) + bi.astype(jnp.float32)
    return W, bias


def _vmem_capacity_bytes():
    try:
        return int(pltpu.get_tpu_info().vmem_capacity_bytes)
    except Exception:
        return 64 << 20  # conservative fallback (v7x physical VMEM)


def _num_tensorcores():
    """Best-effort TensorCore count (v7x: 2 TCs/chip, v5e/v6e: 1)."""
    try:
        info = pltpu.get_tpu_info()
        for attr in ("num_cores", "core_count", "num_tensorcores"):
            v = getattr(info, attr, None)
            if v:
                return max(1, int(v))
    except Exception:
        pass
    try:
        return max(1, int(getattr(jax.devices()[0], "num_cores", 1)))
    except Exception:
        return 1


def net_forward_fused(params, x, n_layers, *, block_batch=512,
                      use_bf16_inputs=False):
    """Forward of `Net`: the first n_layers Linear layers (no activation),
    fused into ONE pallas_call doing a single lane-dense matmul per batch tile.

    x: (B, Din0);  params[i] = (w_i, b_i) with w_i of shape (Din_i, Dout_i).
    """
    params = params[:n_layers]
    B, Din = x.shape
    Dout = params[-1][0].shape[1]
    out_dtype = x.dtype

    # (1) Fold the whole chain into one affine map.
    W_eff, b_eff = fold_affine_chain(params, n_layers)

    # (2) Lane-dense packing factor G (pack G batch rows per slab row so the
    #     kernel's output width is a full 128 lanes).
    G = 1
    if Dout < 128 and 128 % Dout == 0:
        g = 128 // Dout
        if g * g * Din * Dout * 4 <= (4 << 20):   # keep block-diag weight small
            G = g
    rows = _cdiv(B, G)        # slab rows of real data
    K = G * Din               # packed contraction width
    N = G * Dout              # packed output width (== 128 when G > 1)

    # (3) Batch tile in slab rows: large tiles, multiple of 8 sublanes
    #     (16 when inputs are bf16).
    sub = 16 if use_bf16_inputs else 8
    tm = max(sub, _round_up(max(block_batch // G, 1), sub))
    tm = min(tm, _round_up(rows, sub))
    # On multi-TC chips (v7x) keep >= n_tc grid tiles when there is real work
    # so the "parallel" batch axis is sharded across cores.
    n_tc = _num_tensorcores()
    if n_tc > 1 and rows >= n_tc * sub:
        tm = min(tm, _round_up(_cdiv(rows, n_tc), sub))
    rows_p = _round_up(rows, tm)
    nb = rows_p // tm
    Bp = rows_p * G

    # Pad the batch and pack into the slab layout (cheap wrapper-side ops;
    # the reshape is a pure row-major view change).
    if Bp != B:
        x = jnp.pad(x, ((0, Bp - B), (0, 0)))
    x_slab = x.reshape(rows_p, K)
    if G > 1:
        W_slab = jnp.kron(jnp.eye(G, dtype=jnp.float32), W_eff)  # block-diag
        b_slab = jnp.tile(b_eff, G)
    else:
        W_slab, b_slab = W_eff, b_eff
    b_slab = b_slab.reshape(1, N).astype(jnp.float32)

    in_dtype = jnp.bfloat16 if use_bf16_inputs else x_slab.dtype
    x_slab = x_slab.astype(in_dtype)
    W_slab = W_slab.astype(in_dtype)

    # (4) VMEM budget from actual buffers (x/out tiles double-buffered by the
    #     pipeline, weights counted double-buffered too), + compiler headroom,
    #     capped against this chip's physical VMEM.
    itemsize_in = jnp.dtype(in_dtype).itemsize
    itemsize_out = jnp.dtype(out_dtype).itemsize
    need = (2 * tm * K * itemsize_in
            + 2 * tm * N * itemsize_out
            + 2 * (W_slab.size * itemsize_in + N * 4)
            + (4 << 20))
    vmem_limit = int(min(need, (_vmem_capacity_bytes() * 3) // 4))

    out_slab = pl.pallas_call(
        _affine_kernel,
        out_shape=jax.ShapeDtypeStruct((rows_p, N), out_dtype),
        grid=(nb,),
        in_specs=[
            pl.BlockSpec((tm, K), lambda i: (i, 0)),   # x: tiled over batch
            pl.BlockSpec((K, N), lambda i: (0, 0)),    # W: DMA'd once, VMEM-resident
            pl.BlockSpec((1, N), lambda i: (0, 0)),    # b: VMEM-resident
        ],
        out_specs=pl.BlockSpec((tm, N), lambda i: (i, 0)),
        compiler_params=pltpu.CompilerParams(
            dimension_semantics=("parallel",),         # batch tiles independent
            vmem_limit_bytes=vmem_limit,
        ),
    )(x_slab, W_slab, b_slab)

    out = out_slab.reshape(Bp, Dout)
    return out[:B] if Bp != B else out

# TODO(synk): for very large Din/Dout replace the full-extent weight block with
# a K-tiled accumulation grid (matmul P1+P3) and single-buffered weights
# (pipeline_mode=pl.Buffered(1)); unnecessary at these MLP sizes.


def init_net_params(key, n_layers, in_neurons, out_neurons, dtype=jnp.float32):
    """Deterministic init mirroring nn.Linear default (uniform +/- 1/sqrt(fan_in))."""
    params = []
    for i in range(n_layers):
        key, kw, kb = jax.random.split(key, 3)
        bound = 1.0 / (in_neurons[i] ** 0.5)
        w = jax.random.uniform(
            kw, (in_neurons[i], out_neurons[i]), dtype, minval=-bound, maxval=bound
        )
        b = jax.random.uniform(
            kb, (out_neurons[i],), dtype, minval=-bound, maxval=bound
        )
        params.append((w, b))
    return params


if __name__ == "__main__":
    # Small shapes consistent with the module: a 3-layer MLP.
    n_layers = 3
    in_neurons = [32, 64, 16]
    out_neurons = [64, 16, 8]
    batch = 64

    key = jax.random.PRNGKey(0)
    key, kx = jax.random.split(key)
    x = jax.random.normal(kx, (batch, in_neurons[0]), jnp.float32)
    params = init_net_params(key, n_layers, in_neurons, out_neurons)

    fwd = jax.jit(functools.partial(net_forward_fused, n_layers=n_layers))
    out = jax.block_until_ready(fwd(params, x))

    # Pure-JAX reference (mirrors Net.forward; full-f32 like PyTorch Linear).
    ref = x
    for w, b in params[:n_layers]:
        ref = jnp.dot(ref, w, precision=jax.lax.Precision.HIGHEST) + b

    assert out.shape == (batch, out_neurons[-1])
    # Tolerance covers MXU default-precision f32 matmul + reassociation from
    # folding the affine chain, vs. the full-f32 layer-by-layer reference.
    assert jnp.allclose(out, ref, atol=2e-3, rtol=1e-3)

    print("KERNEL_OK")
</pallas_src>

<mosaic_0001>
module attributes {stable_mosaic.version = 11 : i64} {
  func.func @_affine_kernel(%arg0: i32, %arg1: memref<8x512xf32, #tpu.memory_space<vmem>>, %arg2: memref<512x128xf32, #tpu.memory_space<vmem>>, %arg3: memref<1x128xf32, #tpu.memory_space<vmem>>, %arg4: memref<8x128xf32, #tpu.memory_space<vmem>>) attributes {dimension_semantics = [#tpu.dimension_semantics<parallel>], iteration_bounds = array<i64: 1>, scalar_prefetch = 0 : i64, scratch_operands = 0 : i64, tpu.core_type = #tpu.core_type<tc>, window_params = [{transform_indices = @transform_0, window_bounds = array<i64: 8, 512>}, {pipeline_mode = #tpu.pipeline_mode<synchronous>, transform_indices = @transform_1, window_bounds = array<i64: 512, 128>}, {pipeline_mode = #tpu.pipeline_mode<synchronous>, transform_indices = @transform_2, window_bounds = array<i64: 1, 128>}, {transform_indices = @transform_3, window_bounds = array<i64: 8, 128>}]} {
    %c0 = arith.constant 0 : index
    %c0_0 = arith.constant 0 : index
    %0 = vector.load %arg1[%c0, %c0_0] : memref<8x512xf32, #tpu.memory_space<vmem>>, vector<8x512xf32>
    %c0_1 = arith.constant 0 : index
    %c0_2 = arith.constant 0 : index
    %1 = vector.load %arg2[%c0_1, %c0_2] : memref<512x128xf32, #tpu.memory_space<vmem>>, vector<512x128xf32>
    %cst = arith.constant dense<0.000000e+00> : vector<8x128xf32>
    %2 = tpu.matmul %0, %1, %cst {dimension_numbers = #tpu.dot_dimension_numbers<[1], [0], [0], [1], [0, 0, 1, 1], [], []>} : vector<8x512xf32>, vector<512x128xf32>, vector<8x128xf32> -> vector<8x128xf32>
    %c0_3 = arith.constant 0 : index
    %c0_4 = arith.constant 0 : index
    %3 = vector.load %arg3[%c0_3, %c0_4] : memref<1x128xf32, #tpu.memory_space<vmem>>, vector<1x128xf32>
    %4 = vector.broadcast %3 : vector<1x128xf32> to vector<8x128xf32>
    %5 = arith.addf %2, %4 : vector<8x128xf32>
    %c0_5 = arith.constant 0 : index
    %c0_6 = arith.constant 0 : index
    %6 = vector.load %arg4[%c0_5, %c0_6] : memref<8x128xf32, #tpu.memory_space<vmem>>, vector<8x128xf32>
    tpu.vector_store %arg4[%c0_5, %c0_6], %5 {strides = array<i32>} : memref<8x128xf32, #tpu.memory_space<vmem>>, vector<8x128xf32>,
    return
  }
  func.func @transform_0(%arg0: i32) -> (i32, i32) {
    %c0_i32 = arith.constant 0 : i32
    %c0_i32_0 = arith.constant 0 : i32
    return %arg0, %c0_i32 : i32, i32
  }
  func.func @transform_1(%arg0: i32) -> (i32, i32) {
    %c0_i32 = arith.constant 0 : i32
    %c0_i32_0 = arith.constant 0 : i32
    %c0_i32_1 = arith.constant 0 : i32
    return %c0_i32, %c0_i32_0 : i32, i32
  }
  func.func @transform_2(%arg0: i32) -> (i32, i32) {
    %c0_i32 = arith.constant 0 : i32
    %c0_i32_0 = arith.constant 0 : i32
    %c0_i32_1 = arith.constant 0 : i32
    return %c0_i32, %c0_i32_0 : i32, i32
  }
  func.func @transform_3(%arg0: i32) -> (i32, i32) {
    %c0_i32 = arith.constant 0 : i32
    %c0_i32_0 = arith.constant 0 : i32
    return %arg0, %c0_i32 : i32, i32
  }
}

</mosaic_0001>

<llo_original>
// kernel: tile.8
$region0: #{tile.8}
  #allocation0 [shape = 's32[1]{0}', space=sflag, size = 0x4, scoped, tag = 'scoped memory for tile.8']
  %s0 = inlined_call_operand.vmem [shape: f32[8], index: 0, kind: input, shape index: {}]
  %s1 = inlined_call_operand.vmem [shape: f32[16,8], index: 1, kind: output, shape index: {}]
  // Predicated region
  $region2: #{tile.8} parent=0 // pred_check
    _
  $region3: #{tile.8} parent=0 // pred_check_branch
    %3 = sbr.rel (0) target = $region5
  $region4: #{tile.8} parent=0 // pred_region
    _
  $region5: #{tile.8} parent=0 // pred_fallthru
    _
  %v4 = vld [vmem:[%s0] ss:$0 sm:$0xff]
  %5 = vst [vmem:[%s1] sm:$0xff] %v4
  %s6 = scalar_lea.vmem %s1, 8
  %7 = vst [vmem:[%s6] sm:$0xff] %v4

// kernel: tile.9
$region0: #{tile.9}
  %s0 = inlined_call_operand.vmem [shape: f32[16,8], index: 0, kind: input, shape index: {}]
  %s1 = inlined_call_operand.vmem [shape: f32[1,128], index: 1, kind: output, shape index: {}]
  $region1: #{tile.9} parent=0
    #allocation0 [shape = 'u8[4096]{0}', space=vmem, size = 0x1000, scoped, tag = 'scoped mem for output reshape']
    %v2 = vld [vmem:[%s0] sm:$0x1]
    %vm3 = vcmask 64512
    %4 = vst.msk [vmem:[#allocation0] sm:$0x1] %vm3, %v2
    %s5 = scalar_lea.vmem %s0, 15
    %v6 = vld [vmem:[%s5] sm:$0x1]
    %7 = vrot.lane.b32.xlu0 %v6, 120
    %v8 = vpop.permute.xlu0 %7
    %vm9 = vcmask 1048512
    %10 = vst.msk [vmem:[#allocation0] sm:$0x1] %vm9, %v8
    %s11 = scalar_lea.vmem %s0, 14
    %v12 = vld [vmem:[%s11] sm:$0x1]
    %13 = vrot.lane.b32.xlu0 %v12, 112
    %v14 = vpop.permute.xlu0 %13
    %vm15 = vcmask 982912
    %16 = vst.msk [vmem:[#allocation0] sm:$0x1] %vm15, %v14
    %s17 = scalar_lea.vmem %s0, 13
    %v18 = vld [vmem:[%s17] sm:$0x1]
    %19 = vrot.lane.b32.xlu0 %v18, 104
    %v20 = vpop.permute.xlu0 %19
    %vm21 = vcmask 917312
    %22 = vst.msk [vmem:[#allocation0] sm:$0x1] %vm21, %v20
    %s23 = scalar_lea.vmem %s0, 12
    %v24 = vld [vmem:[%s23] sm:$0x1]
    %25 = vrot.lane.b32.xlu0 %v24, 96
    %v26 = vpop.permute.xlu0 %25
    %vm27 = vcmask 851712
    %28 = vst.msk [vmem:[#allocation0] sm:$0x1] %vm27, %v26
    %s29 = scalar_lea.vmem %s0, 11
    %v30 = vld [vmem:[%s29] sm:$0x1]
    %31 = vrot.lane.b32.xlu0 %v30, 88
    %v32 = vpop.permute.xlu0 %31
    %vm33 = vcmask 786112
    %34 = vst.msk [vmem:[#allocation0] sm:$0x1] %vm33, %v32
    %s35 = scalar_lea.vmem %s0, 10
    %v36 = vld [vmem:[%s35] sm:$0x1]
    %37 = vrot.lane.b32.xlu0 %v36, 80
    %v38 = vpop.permute.xlu0 %37
    %vm39 = vcmask 720512
    %40 = vst.msk [vmem:[#allocation0] sm:$0x1] %vm39, %v38
    %s41 = scalar_lea.vmem %s0, 9
    %v42 = vld [vmem:[%s41] sm:$0x1]
    %43 = vrot.lane.b32.xlu0 %v42, 72
    %v44 = vpop.permute.xlu0 %43
    %vm45 = vcmask 654912
    %46 = vst.msk [vmem:[#allocation0] sm:$0x1] %vm45, %v44
    %s47 = scalar_lea.vmem %s0, 8
    %v48 = vld [vmem:[%s47] sm:$0x1]
    %49 = vrot.lane.b32.xlu0 %v48, 64
    %v50 = vpop.permute.xlu0 %49
    %vm51 = vcmask 589312
    %52 = vst.msk [vmem:[#allocation0] sm:$0x1] %vm51, %v50
    %s53 = scalar_lea.vmem %s0, 7
    %v54 = vld [vmem:[%s53] sm:$0x1]
    %55 = vrot.lane.b32.xlu0 %v54, 56
    %v56 = vpop.permute.xlu0 %55
    %vm57 = vcmask 523712
    %58 = vst.msk [vmem:[#allocation0] sm:$0x1] %vm57, %v56
    %s59 = scalar_lea.vmem %s0, 6
    %v60 = vld [vmem:[%s59] sm:$0x1]
    %61 = vrot.lane.b32.xlu0 %v60, 48
    %v62 = vpop.permute.xlu0 %61
    %vm63 = vcmask 458112
    %64 = vst.msk [vmem:[#allocation0] sm:$0x1] %vm63, %v62
    %s65 = scalar_lea.vmem %s0, 5
    %v66 = vld [vmem:[%s65] sm:$0x1]
    %67 = vrot.lane.b32.xlu0 %v66, 40
    %v68 = vpop.permute.xlu0 %67
    %vm69 = vcmask 392512
    %70 = vst.msk [vmem:[#allocation0] sm:$0x1] %vm69, %v68
    %s71 = scalar_lea.vmem %s0, 4
    %v72 = vld [vmem:[%s71] sm:$0x1]
    %73 = vrot.lane.b32.xlu0 %v72, 32
    %v74 = vpop.permute.xlu0 %73
    %vm75 = vcmask 326912
    %76 = vst.msk [vmem:[#allocation0] sm:$0x1] %vm75, %v74
    %s77 = scalar_lea.vmem %s0, 3
    %v78 = vld [vmem:[%s77] sm:$0x1]
    %79 = vrot.lane.b32.xlu0 %v78, 24
    %v80 = vpop.permute.xlu0 %79
    %vm81 = vcmask 261312
    %82 = vst.msk [vmem:[#allocation0] sm:$0x1] %vm81, %v80
    %s83 = scalar_lea.vmem %s0, 2
    %v84 = vld [vmem:[%s83] sm:$0x1]
    %85 = vrot.lane.b32.xlu0 %v84, 16
    %v86 = vpop.permute.xlu0 %85
    %vm87 = vcmask 195712
    %88 = vst.msk [vmem:[#allocation0] sm:$0x1] %vm87, %v86
    %s89 = scalar_lea.vmem %s0, 1
    %v90 = vld [vmem:[%s89] sm:$0x1]
    %91 = vrot.lane.b32.xlu0 %v90, 8
    %v92 = vpop.permute.xlu0 %91
    %vm93 = vcmask 130112
    %94 = vst.msk [vmem:[#allocation0] sm:$0x1] %vm93, %v92
    %s96 = sshllo.u32 0, 1
    %v98 = vld [vmem:[#allocation0] sm:%s96]
    %s99 = sshllo.u32 0, 1
    %100 = vst [vmem:[%s1] sm:%s99] %v98

// kernel: net_forward_fused.1
$region0: #{net_forward_fused.1}
  #allocation0 [shape = 'u32[]', space=smem, size = 0x4, offset = 0x4, fixed_abs, tag = 'smem constant byte address 0x4 - core index']
  #allocation1 [shape = 'u32[144,128]{1,0:T(1,128)}', space=vmem, size = 0x12000, scoped, tag = 'internal scratch']
  %s0 = inlined_call_operand.vmem [shape: f32[8,512], index: 0, kind: input, shape index: {}]
  %s1 = inlined_call_operand.vmem [shape: f32[512,128], index: 1, kind: input, shape index: {}]
  %s2 = inlined_call_operand.vmem [shape: f32[1,128], index: 2, kind: input, shape index: {}]
  %s3 = inlined_call_operand.vmem [shape: f32[8,128], index: 3, kind: output, shape index: {}]
  %s4 = sld [smem:[#allocation0]]
  $region22: #{net_forward_fused.1} parent=0
    _
  %s6 = ssub.s32 1, %s4
  %s7 = scalar_select 0, %s6, %s4
  // Predicated region
  $region2: #{net_forward_fused.1} parent=0 // pred_check
    _
  $region3: #{net_forward_fused.1} parent=0 // pred_check_branch
    %9 = sbr.rel (0) target = $region5
  $region4: #{net_forward_fused.1} parent=0 // pred_region
    _
  $region5: #{net_forward_fused.1} parent=0 // pred_fallthru
    _
  // Predicated region
  $region6: #{net_forward_fused.1} parent=0 // pred_check
    _
  $region7: #{net_forward_fused.1} parent=0 // pred_check_branch
    %11 = sbr.rel (0) target = $region9
  $region8: #{net_forward_fused.1} parent=0 // pred_region
    _
  $region9: #{net_forward_fused.1} parent=0 // pred_fallthru
    _
  // Predicated region
  $region10: #{net_forward_fused.1} parent=0 // pred_check
    _
  $region11: #{net_forward_fused.1} parent=0 // pred_check_branch
    %13 = sbr.rel (0) target = $region13
  $region12: #{net_forward_fused.1} parent=0 // pred_region
    _
  $region13: #{net_forward_fused.1} parent=0 // pred_fallthru
    _
  %v14 = vld [vmem:[%s0] sm:$0xff]
  %v15 = vld [vmem:[%s0 + $0x8] sm:$0xff]
  %v16 = vld [vmem:[%s0 + $0x10] sm:$0xff]
  %v17 = vld [vmem:[%s0 + $0x18] sm:$0xff]
  %v18 = vld [vmem:[%s1] sm:$0xff]
  %v19 = vld [vmem:[%s1 + $0x8] sm:$0xff]
  %v20 = vld [vmem:[%s1 + $0x10] sm:$0xff]
  %v21 = vld [vmem:[%s1 + $0x18] sm:$0xff]
  %v22 = vld [vmem:[%s1 + $0x20] sm:$0xff]
  %v23 = vld [vmem:[%s1 + $0x28] sm:$0xff]
  %v24 = vld [vmem:[%s1 + $0x30] sm:$0xff]
  %v25 = vld [vmem:[%s1 + $0x38] sm:$0xff]
  %v26 = vld [vmem:[%s1 + $0x40] sm:$0xff]
  %v27 = vld [vmem:[%s1 + $0x48] sm:$0xff]
  %v28 = vld [vmem:[%s1 + $0x50] sm:$0xff]
  %v29 = vld [vmem:[%s1 + $0x58] sm:$0xff]
  %v30 = vld [vmem:[%s1 + $0x60] sm:$0xff]
  %v31 = vld [vmem:[%s1 + $0x68] sm:$0xff]
  %v32 = vld [vmem:[%s1 + $0x70] sm:$0xff]
  %v33 = vld [vmem:[%s1 + $0x78] sm:$0xff]
  %v34 = vld [vmem:[%s1 + $0x80] sm:$0xff]
  %v35 = vld [vmem:[%s1 + $0x88] sm:$0xff]
  %v36 = vld [vmem:[%s1 + $0x90] sm:$0xff]
  %v37 = vld [vmem:[%s1 + $0x98] sm:$0xff]
  %v38 = vld [vmem:[%s1 + $0xa0] sm:$0xff]
  %v39 = vld [vmem:[%s1 + $0xa8] sm:$0xff]
  %v40 = vld [vmem:[%s1 + $0xb0] sm:$0xff]
  %v41 = vld [vmem:[%s1 + $0xb8] sm:$0xff]
  %v42 = vld [vmem:[%s1 + $0xc0] sm:$0xff]
  %v43 = vld [vmem:[%s1 + $0xc8] sm:$0xff]
  %v44 = vld [vmem:[%s1 + $0xd0] sm:$0xff]
  %v45 = vld [vmem:[%s1 + $0xd8] sm:$0xff]
  %v46 = vld [vmem:[%s1 + $0xe0] sm:$0xff]
  %v47 = vld [vmem:[%s1 + $0xe8] sm:$0xff]
  %v48 = vld [vmem:[%s1 + $0xf0] sm:$0xff]
  %v49 = vld [vmem:[%s1 + $0xf8] sm:$0xff]
  %v50 = vld [vmem:[%s1 + $0x100] sm:$0xff]
  %v51 = vld [vmem:[%s1 + $0x108] sm:$0xff]
  %v52 = vld [vmem:[%s1 + $0x110] sm:$0xff]
  %v53 = vld [vmem:[%s1 + $0x118] sm:$0xff]
  %v54 = vld [vmem:[%s1 + $0x120] sm:$0xff]
  %v55 = vld [vmem:[%s1 + $0x128] sm:$0xff]
  %v56 = vld [vmem:[%s1 + $0x130] sm:$0xff]
  %v57 = vld [vmem:[%s1 + $0x138] sm:$0xff]
  %v58 = vld [vmem:[%s1 + $0x140] sm:$0xff]
  %v59 = vld [vmem:[%s1 + $0x148] sm:$0xff]
  %v60 = vld [vmem:[%s1 + $0x150] sm:$0xff]
  %v61 = vld [vmem:[%s1 + $0x158] sm:$0xff]
  %v62 = vld [vmem:[%s1 + $0x160] sm:$0xff]
  %v63 = vld [vmem:[%s1 + $0x168] sm:$0xff]
  %v64 = vld [vmem:[%s1 + $0x170] sm:$0xff]
  %v65 = vld [vmem:[%s1 + $0x178] sm:$0xff]
  %v66 = vld [vmem:[%s1 + $0x180] sm:$0xff]
  %v67 = vld [vmem:[%s1 + $0x188] sm:$0xff]
  %v68 = vld [vmem:[%s1 + $0x190] sm:$0xff]
  %v69 = vld [vmem:[%s1 + $0x198] sm:$0xff]
  %v70 = vld [vmem:[%s1 + $0x1a0] sm:$0xff]
  %v71 = vld [vmem:[%s1 + $0x1a8] sm:$0xff]
  %v72 = vld [vmem:[%s1 + $0x1b0] sm:$0xff]
  %v73 = vld [vmem:[%s1 + $0x1b8] sm:$0xff]
  %v74 = vld [vmem:[%s1 + $0x1c0] sm:$0xff]
  %v75 = vld [vmem:[%s1 + $0x1c8] sm:$0xff]
  %v76 = vld [vmem:[%s1 + $0x1d0] sm:$0xff]
  %v77 = vld [vmem:[%s1 + $0x1d8] sm:$0xff]
  %v78 = vld [vmem:[%s1 + $0x1e0] sm:$0xff]
  %v79 = vld [vmem:[%s1 + $0x1e8] sm:$0xff]
  %v80 = vld [vmem:[%s1 + $0x1f0] sm:$0xff]
  %v81 = vld [vmem:[%s1 + $0x1f8] sm:$0xff]
  %v82 = vld [vmem:[%s2] sm:$0x1]
  %v84 = vlaneseq
  %v85 = vshrl.u32 %v84, 7
  %v86 = vsub.s32 0, %v85
  %v87 = vrot.slane %v82, %v86
  %89 = vmatprep.subr.mxu0 0.0
  %90 = vmatpush1.msra.mxu0 %v18
  %91 = vmatprep.subr.mxu0 0.0
  %92 = vmatpush1.msra.mxu0 %v19
  %93 = vmatprep.subr.mxu0 0.0
  %94 = vmatpush1.msra.mxu0 %v20
  %95 = vmatprep.subr.mxu0 0.0
  %96 = vmatpush1.msra.mxu0 %v21
  %97 = vmatprep.subr.mxu0 0.0
  %98 = vmatpush1.msra.mxu0 %v22
  %99 = vmatprep.subr.mxu0 0.0
  %100 = vmatpush1.msra.mxu0 %v23
  %101 = vmatprep.subr.mxu0 0.0
  %102 = vmatpush1.msra.mxu0 %v24
  %103 = vmatprep.subr.mxu0 0.0
  %104 = vmatpush1.msra.mxu0 %v25
  %105 = vmatprep.subr.mxu0 0.0
  %106 = vmatpush1.msra.mxu0 %v26
  %107 = vmatprep.subr.mxu0 0.0
  %108 = vmatpush1.msra.mxu0 %v27
  %109 = vmatprep.subr.mxu0 0.0
  %110 = vmatpush1.msra.mxu0 %v28
  %111 = vmatprep.subr.mxu0 0.0
  %112 = vmatpush1.msra.mxu0 %v29
  %113 = vmatprep.subr.mxu0 0.0
  %114 = vmatpush1.msra.mxu0 %v30
  %115 = vmatprep.subr.mxu0 0.0
  %116 = vmatpush1.msra.mxu0 %v31
  %117 = vmatprep.subr.mxu0 0.0
  %118 = vmatpush1.msra.mxu0 %v32
  %119 = vmatprep.subr.mxu0 0.0
  %120 = vmatpush1.msra.mxu0 %v33
  %121 = vmatprep.subr.mxu0 0.0
  %122 = vmatpush1.msra.mxu0 %v34
  %123 = vmatprep.subr.mxu0 0.0
  %124 = vmatpush1.msra.mxu0 %v35
  %125 = vmatprep.subr.mxu0 0.0
  %126 = vmatpush1.msra.mxu0 %v36
  %127 = vmatprep.subr.mxu0 0.0
  %128 = vmatpush1.msra.mxu0 %v37
  %129 = vmatprep.subr.mxu0 0.0
  %130 = vmatpush1.msra.mxu0 %v38
  %131 = vmatprep.subr.mxu0 0.0
  %132 = vmatpush1.msra.mxu0 %v39
  %133 = vmatprep.subr.mxu0 0.0
  %134 = vmatpush1.msra.mxu0 %v40
  %135 = vmatprep.subr.mxu0 0.0
  %136 = vmatpush1.msra.mxu0 %v41
  %137 = vmatprep.subr.mxu0 0.0
  %138 = vmatpush1.msra.mxu0 %v42
  %139 = vmatprep.subr.mxu0 0.0
  %140 = vmatpush1.msra.mxu0 %v43
  %141 = vmatprep.subr.mxu0 0.0
  %142 = vmatpush1.msra.mxu0 %v44
  %143 = vmatprep.subr.mxu0 0.0
  %144 = vmatpush1.msra.mxu0 %v45
  %145 = vmatprep.subr.mxu0 0.0
  %146 = vmatpush1.msra.mxu0 %v46
  %147 = vmatprep.subr.mxu0 0.0
  %148 = vmatpush1.msra.mxu0 %v47
  %149 = vmatprep.subr.mxu0 0.0
  %150 = vmatpush1.msra.mxu0 %v48
  %151 = vmatprep.subr.mxu0 0.0
  %152 = vmatpush1.msra.mxu0 %v49
  %153 = vmatprep.mubr.f32.mxu0 %v15
  %154 = vmatmul.mubr.f32.gmra.mrb[0].mxu0 %v14
  %v155 = vpop.f32.mrb[0].mxu0
  %v156 = vadd.f32 %v87, %v155
  %v157 = vpop.f32.mrb[0].mxu0
  %158 = vdwg.mxu0
  %159 = vmatprep.subr.mxu0 0.0
  %160 = vmatpush1.msra.mxu0 %v50
  %161 = vmatprep.subr.mxu0 0.0
  %162 = vmatpush1.msra.mxu0 %v51
  %163 = vmatprep.subr.mxu0 0.0
  %164 = vmatpush1.msra.mxu0 %v52
  %165 = vmatprep.subr.mxu0 0.0
  %166 = vmatpush1.msra.mxu0 %v53
  %167 = vmatprep.subr.mxu0 0.0
  %168 = vmatpush1.msra.mxu0 %v54
  %169 = vmatprep.subr.mxu0 0.0
  %170 = vmatpush1.msra.mxu0 %v55
  %171 = vmatprep.subr.mxu0 0.0
  %172 = vmatpush1.msra.mxu0 %v56
  %173 = vmatprep.subr.mxu0 0.0
  %174 = vmatpush1.msra.mxu0 %v57
  %175 = vmatprep.subr.mxu0 0.0
  %176 = vmatpush1.msra.mxu0 %v58
  %177 = vmatprep.subr.mxu0 0.0
  %178 = vmatpush1.msra.mxu0 %v59
  %179 = vmatprep.subr.mxu0 0.0
  %180 = vmatpush1.msra.mxu0 %v60
  %181 = vmatprep.subr.mxu0 0.0
  %182 = vmatpush1.msra.mxu0 %v61
  %183 = vmatprep.subr.mxu0 0.0
  %184 = vmatpush1.msra.mxu0 %v62
  %185 = vmatprep.subr.mxu0 0.0
  %186 = vmatpush1.msra.mxu0 %v63
  %187 = vmatprep.subr.mxu0 0.0
  %188 = vmatpush1.msra.mxu0 %v64
  %189 = vmatprep.subr.mxu0 0.0
  %190 = vmatpush1.msra.mxu0 %v65
  %191 = vmatprep.subr.mxu0 0.0
  %192 = vmatpush1.msra.mxu0 %v66
  %193 = vmatprep.subr.mxu0 0.0
  %194 = vmatpush1.msra.mxu0 %v67
  %195 = vmatprep.subr.mxu0 0.0
  %196 = vmatpush1.msra.mxu0 %v68
  %197 = vmatprep.subr.mxu0 0.0
  %198 = vmatpush1.msra.mxu0 %v69
  %199 = vmatprep.subr.mxu0 0.0
  %200 = vmatpush1.msra.mxu0 %v70
  %201 = vmatprep.subr.mxu0 0.0
  %202 = vmatpush1.msra.mxu0 %v71
  %203 = vmatprep.subr.mxu0 0.0
  %204 = vmatpush1.msra.mxu0 %v72
  %205 = vmatprep.subr.mxu0 0.0
  %206 = vmatpush1.msra.mxu0 %v73
  %207 = vmatprep.subr.mxu0 0.0
  %208 = vmatpush1.msra.mxu0 %v74
  %209 = vmatprep.subr.mxu0 0.0
  %210 = vmatpush1.msra.mxu0 %v75
  %211 = vmatprep.subr.mxu0 0.0
  %212 = vmatpush1.msra.mxu0 %v76
  %213 = vmatprep.subr.mxu0 0.0
  %214 = vmatpush1.msra.mxu0 %v77
  %215 = vmatprep.subr.mxu0 0.0
  %216 = vmatpush1.msra.mxu0 %v78
  %217 = vmatprep.subr.mxu0 0.0
  %218 = vmatpush1.msra.mxu0 %v79
  %219 = vmatprep.subr.mxu0 0.0
  %220 = vmatpush1.msra.mxu0 %v80
  %221 = vmatprep.subr.mxu0 0.0
  %222 = vmatpush1.msra.mxu0 %v81
  %223 = vmatprep.mubr.f32.mxu0 %v17
  %224 = vmatmul.mubr.f32.gmra.mrb[0].mxu0 %v16
  %v225 = vpop.f32.mrb[0].mxu0
  %v226 = vadd.f32 %v156, %v225
  %v227 = vpop.f32.mrb[0].mxu0
  %228 = vdwg.mxu0
  %229 = vst [vmem:[%s3] sm:$0xff] %v226
  // Predicated region
  $region14: #{net_forward_fused.1} parent=0 // pred_check
    _
  $region15: #{net_forward_fused.1} parent=0 // pred_check_branch
    %231 = sbr.rel (0) target = $region17
  $region16: #{net_forward_fused.1} parent=0 // pred_region
    _
  $region17: #{net_forward_fused.1} parent=0 // pred_fallthru
    _
  // Predicated region
  $region18: #{net_forward_fused.1} parent=0 // pred_check
    _
  $region19: #{net_forward_fused.1} parent=0 // pred_check_branch
    %233 = sbr.rel (0) target = $region21
  $region20: #{net_forward_fused.1} parent=0 // pred_region
    _
  $region21: #{net_forward_fused.1} parent=0 // pred_fallthru
    _

</llo_original>
